<compile_context>
chip_gen: v6e
topology: v6e:2x2x1
jax: 0.10.0
libtpu: 0.0.40
codegen_flags: <defaults>
</compile_context>

<pallas_src>
import functools

import jax
import jax.numpy as jnp
from jax.experimental import pallas as pl
from jax.experimental.pallas import tpu as pltpu


def actor_kernel(obs_ref, g_ref, w1_ref, b1_ref, w2_ref, b2_ref,
                 logits_ref, packed_ref):
    obs = obs_ref[...]                                              # (TB, obs_dim) f32

    # fc1 + ReLU
    h = jnp.dot(obs, w1_ref[...], preferred_element_type=jnp.float32) + b1_ref[...]
    h = jnp.maximum(h, 0.0)                                         # (TB, units)

    # fc2 -> logits
    logits = jnp.dot(h, w2_ref[...], preferred_element_type=jnp.float32) + b2_ref[...]
    logits_ref[...] = logits                                        # (TB, A)

    # numerically stable log-softmax
    m = jnp.max(logits, axis=-1, keepdims=True)
    z = logits - m                                                  # <= 0
    ez = jnp.exp(z)
    lse = jnp.log(jnp.sum(ez, axis=-1, keepdims=True))
    logsm = z - lse                                                 # (TB, A)

    # Categorical sample via Gumbel-max; Gumbel noise comes in pre-generated (per tile).
    perturbed = z + g_ref[...]                                      # argmax == argmax(logits + g)
    A = logits.shape[-1]
    col = jax.lax.broadcasted_iota(jnp.int32, perturbed.shape, 1)   # (TB, A)
    pmax = jnp.max(perturbed, axis=-1, keepdims=True)
    action = jnp.min(jnp.where(perturbed == pmax, col, jnp.int32(A)),
                     axis=-1, keepdims=True)                        # (TB, 1) int32

    # gather log-prob of the sampled action via one-hot select
    logp = jnp.sum(jnp.where(col == action, logsm, 0.0),
                   axis=-1, keepdims=True)                          # (TB, 1) f32

    # lane-dense packed output: lane 0 = action (as f32, exact for small ints),
    # lane 1 = log_p, remaining lanes zero.
    lane = jax.lax.broadcasted_iota(jnp.int32, packed_ref.shape, 1)
    packed_ref[...] = jnp.where(lane == 0, action.astype(jnp.float32),
                                jnp.where(lane == 1, logp, 0.0))


@functools.partial(jax.jit, static_argnames=("tile_b",))
def _actor_call(obs_pad, gumbel, w1, b1, w2, b2, *, tile_b):
    B_pad, obs_dim = obs_pad.shape
    units = w1.shape[1]
    A = w2.shape[1]
    TB = tile_b
    grid = (B_pad // TB,)

    cost = pl.CostEstimate(
        flops=2 * B_pad * (obs_dim * units + units * A),
        transcendentals=2 * B_pad * A,
        bytes_accessed=4 * (B_pad * (obs_dim + 3 * A + 128)
                            + obs_dim * units + units + units * A + A),
    )

    logits_pad, packed = pl.pallas_call(
        actor_kernel,
        grid=grid,
        in_specs=[
            pl.BlockSpec((TB, obs_dim), lambda i: (i, 0)),    # obs: tiled over batch
            pl.BlockSpec((TB, A), lambda i: (i, 0)),          # gumbel noise: tiled
            pl.BlockSpec((obs_dim, units), lambda i: (0, 0)),  # weights resident
            pl.BlockSpec((1, units), lambda i: (0, 0)),
            pl.BlockSpec((units, A), lambda i: (0, 0)),
            pl.BlockSpec((1, A), lambda i: (0, 0)),
        ],
        out_specs=(
            pl.BlockSpec((TB, A), lambda i: (i, 0)),
            pl.BlockSpec((TB, 128), lambda i: (i, 0)),
        ),
        out_shape=(
            jax.ShapeDtypeStruct((B_pad, A), jnp.float32),
            jax.ShapeDtypeStruct((B_pad, 128), jnp.float32),
        ),
        compiler_params=pltpu.CompilerParams(
            dimension_semantics=("parallel",)),
        cost_estimate=cost,
    )(obs_pad, gumbel, w1, b1, w2, b2)
    return logits_pad, packed


def actor_forward(obs, w1, b1, w2, b2, key, *, tile_b=1024):
    """obs: (B, obs_dim) f32; w1: (obs_dim, units); b1: (1, units);
    w2: (units, action_dim); b2: (1, action_dim); key: jax PRNG key.
    Returns (action (B,) int32, log_p (B,) f32, logits (B, action_dim) f32)."""
    obs = jnp.asarray(obs, jnp.float32)
    B, obs_dim = obs.shape
    A = w2.shape[1]

    # pad batch to a sublane-aligned multiple of the tile size
    B8 = ((B + 7) // 8) * 8
    TB = min(tile_b, B8)
    B_pad = ((B8 + TB - 1) // TB) * TB
    if B_pad != B:
        obs = jnp.pad(obs, ((0, B_pad - B), (0, 0)))

    # Gumbel noise generated outside the kernel (independent per row/tile).
    gumbel = jax.random.gumbel(key, (B_pad, A), jnp.float32)

    logits_pad, packed = _actor_call(obs, gumbel, w1, b1, w2, b2, tile_b=TB)

    logits = logits_pad[:B]
    action = packed[:B, 0].astype(jnp.int32)
    log_p = packed[:B, 1]
    return action, log_p, logits


def init_params(key, obs_dim, action_dim, units=32):
    """Deterministic init (uniform fan-in, like nn.Linear's default scale)."""
    k1, k2, k3, k4 = jax.random.split(key, 4)
    lim1 = 1.0 / jnp.sqrt(jnp.float32(obs_dim))
    lim2 = 1.0 / jnp.sqrt(jnp.float32(units))
    w1 = jax.random.uniform(k1, (obs_dim, units), jnp.float32, -lim1, lim1)
    b1 = jax.random.uniform(k2, (1, units), jnp.float32, -lim1, lim1)
    w2 = jax.random.uniform(k3, (units, action_dim), jnp.float32, -lim2, lim2)
    b2 = jax.random.uniform(k4, (1, action_dim), jnp.float32, -lim2, lim2)
    return w1, b1, w2, b2


if __name__ == "__main__":
    B, OBS_DIM, ACTION_DIM, UNITS = 8, 16, 4, 32

    key = jax.random.PRNGKey(0)
    kp, kx, ks = jax.random.split(key, 3)
    w1, b1, w2, b2 = init_params(kp, OBS_DIM, ACTION_DIM, UNITS)
    obs = jax.random.normal(kx, (B, OBS_DIM), jnp.float32)

    action, log_p, logits = actor_forward(obs, w1, b1, w2, b2, ks)
    jax.block_until_ready((action, log_p, logits))

    # sanity: shapes, logits vs pure-JAX reference, log_p consistency, valid actions
    assert action.shape == (B,) and log_p.shape == (B,) and logits.shape == (B, ACTION_DIM)
    ref_logits = jnp.maximum(obs @ w1 + b1, 0.0) @ w2 + b2
    assert jnp.allclose(logits, ref_logits, atol=1e-4, rtol=1e-4)
    ref_logsm = jax.nn.log_softmax(logits, axis=-1)
    ref_logp = jnp.take_along_axis(ref_logsm, action[:, None], axis=-1)[:, 0]
    assert jnp.allclose(log_p, ref_logp, atol=1e-5)
    assert bool(jnp.all((action >= 0) & (action < ACTION_DIM)))

    print("KERNEL_OK")
</pallas_src>

<mosaic_0001>
module attributes {stable_mosaic.version = 11 : i64} {
  func.func @actor_kernel(%arg0: i32, %arg1: memref<8x16xf32, #tpu.memory_space<vmem>>, %arg2: memref<8x4xf32, #tpu.memory_space<vmem>>, %arg3: memref<16x32xf32, #tpu.memory_space<vmem>>, %arg4: memref<1x32xf32, #tpu.memory_space<vmem>>, %arg5: memref<32x4xf32, #tpu.memory_space<vmem>>, %arg6: memref<1x4xf32, #tpu.memory_space<vmem>>, %arg7: memref<8x4xf32, #tpu.memory_space<vmem>>, %arg8: memref<8x128xf32, #tpu.memory_space<vmem>>) attributes {dimension_semantics = [#tpu.dimension_semantics<parallel>], iteration_bounds = array<i64: 1>, scalar_prefetch = 0 : i64, scratch_operands = 0 : i64, tpu.core_type = #tpu.core_type<tc>, window_params = [{transform_indices = @transform_0, window_bounds = array<i64: 8, 16>}, {transform_indices = @transform_1, window_bounds = array<i64: 8, 4>}, {pipeline_mode = #tpu.pipeline_mode<synchronous>, transform_indices = @transform_2, window_bounds = array<i64: 16, 32>}, {pipeline_mode = #tpu.pipeline_mode<synchronous>, transform_indices = @transform_3, window_bounds = array<i64: 1, 32>}, {pipeline_mode = #tpu.pipeline_mode<synchronous>, transform_indices = @transform_4, window_bounds = array<i64: 32, 4>}, {pipeline_mode = #tpu.pipeline_mode<synchronous>, transform_indices = @transform_5, window_bounds = array<i64: 1, 4>}, {transform_indices = @transform_6, window_bounds = array<i64: 8, 4>}, {transform_indices = @transform_7, window_bounds = array<i64: 8, 128>}]} {
    %c0 = arith.constant 0 : index
    %c0_0 = arith.constant 0 : index
    %0 = vector.load %arg1[%c0, %c0_0] : memref<8x16xf32, #tpu.memory_space<vmem>>, vector<8x16xf32>
    %c0_1 = arith.constant 0 : index
    %c0_2 = arith.constant 0 : index
    %1 = vector.load %arg3[%c0_1, %c0_2] : memref<16x32xf32, #tpu.memory_space<vmem>>, vector<16x32xf32>
    %cst = arith.constant dense<0.000000e+00> : vector<8x32xf32>
    %2 = tpu.matmul %0, %1, %cst {dimension_numbers = #tpu.dot_dimension_numbers<[1], [0], [0], [1], [0, 0, 1, 1], [], []>} : vector<8x16xf32>, vector<16x32xf32>, vector<8x32xf32> -> vector<8x32xf32>
    %c0_3 = arith.constant 0 : index
    %c0_4 = arith.constant 0 : index
    %3 = vector.load %arg4[%c0_3, %c0_4] : memref<1x32xf32, #tpu.memory_space<vmem>>, vector<1x32xf32>
    %4 = vector.broadcast %3 : vector<1x32xf32> to vector<8x32xf32>
    %5 = arith.addf %2, %4 : vector<8x32xf32>
    %cst_5 = arith.constant 0.000000e+00 : f32
    %6 = vector.broadcast %cst_5 : f32 to vector<8x32xf32>
    %7 = arith.maximumf %5, %6 : vector<8x32xf32>
    %c0_6 = arith.constant 0 : index
    %c0_7 = arith.constant 0 : index
    %8 = vector.load %arg5[%c0_6, %c0_7] : memref<32x4xf32, #tpu.memory_space<vmem>>, vector<32x4xf32>
    %cst_8 = arith.constant dense<0.000000e+00> : vector<8x4xf32>
    %9 = tpu.matmul %7, %8, %cst_8 {dimension_numbers = #tpu.dot_dimension_numbers<[1], [0], [0], [1], [0, 0, 1, 1], [], []>} : vector<8x32xf32>, vector<32x4xf32>, vector<8x4xf32> -> vector<8x4xf32>
    %c0_9 = arith.constant 0 : index
    %c0_10 = arith.constant 0 : index
    %10 = vector.load %arg6[%c0_9, %c0_10] : memref<1x4xf32, #tpu.memory_space<vmem>>, vector<1x4xf32>
    %11 = vector.broadcast %10 : vector<1x4xf32> to vector<8x4xf32>
    %12 = arith.addf %9, %11 : vector<8x4xf32>
    %c0_11 = arith.constant 0 : index
    %c0_12 = arith.constant 0 : index
    %13 = vector.load %arg7[%c0_11, %c0_12] : memref<8x4xf32, #tpu.memory_space<vmem>>, vector<8x4xf32>
    tpu.vector_store %arg7[%c0_11, %c0_12], %12 {strides = array<i32>} : memref<8x4xf32, #tpu.memory_space<vmem>>, vector<8x4xf32>,
    %cst_13 = arith.constant dense<0xFF800000> : vector<8xf32>
    %14 = vector.multi_reduction <maximumf>, %12, %cst_13 [1] : vector<8x4xf32> to vector<8xf32>
    %15 = vector.shape_cast %14 : vector<8xf32> to vector<8x1xf32>
    %16 = vector.broadcast %15 : vector<8x1xf32> to vector<8x4xf32>
    %17 = arith.subf %12, %16 : vector<8x4xf32>
    %18 = math.exp %17 : vector<8x4xf32>
    %cst_14 = arith.constant dense<0.000000e+00> : vector<8xf32>
    %19 = vector.multi_reduction <add>, %18, %cst_14 [1] : vector<8x4xf32> to vector<8xf32>
    %20 = vector.shape_cast %19 : vector<8xf32> to vector<8x1xf32>
    %21 = math.log %20 : vector<8x1xf32>
    %22 = vector.broadcast %21 : vector<8x1xf32> to vector<8x4xf32>
    %23 = arith.subf %17, %22 : vector<8x4xf32>
    %c0_15 = arith.constant 0 : index
    %c0_16 = arith.constant 0 : index
    %24 = vector.load %arg2[%c0_15, %c0_16] : memref<8x4xf32, #tpu.memory_space<vmem>>, vector<8x4xf32>
    %25 = arith.addf %17, %24 : vector<8x4xf32>
    %26 = tpu.iota {dimensions = array<i32: 1>} : vector<8x4xi32>
    %cst_17 = arith.constant dense<0xFF800000> : vector<8xf32>
    %27 = vector.multi_reduction <maximumf>, %25, %cst_17 [1] : vector<8x4xf32> to vector<8xf32>
    %28 = vector.shape_cast %27 : vector<8xf32> to vector<8x1xf32>
    %29 = vector.broadcast %28 : vector<8x1xf32> to vector<8x4xf32>
    %30 = arith.cmpf oeq, %25, %29 : vector<8x4xf32>
    %c4_i32 = arith.constant 4 : i32
    %31 = vector.broadcast %c4_i32 : i32 to vector<8x4xi32>
    %32 = arith.select %30, %26, %31 : vector<8x4xi1>, vector<8x4xi32>
    %cst_18 = arith.constant dense<2147483647> : vector<8xi32>
    %33 = vector.multi_reduction <minsi>, %32, %cst_18 [1] : vector<8x4xi32> to vector<8xi32>
    %34 = vector.shape_cast %33 : vector<8xi32> to vector<8x1xi32>
    %35 = vector.broadcast %34 : vector<8x1xi32> to vector<8x4xi32>
    %36 = arith.cmpi eq, %26, %35 : vector<8x4xi32>
    %cst_19 = arith.constant 0.000000e+00 : f32
    %37 = vector.broadcast %cst_19 : f32 to vector<8x4xf32>
    %38 = arith.select %36, %23, %37 : vector<8x4xi1>, vector<8x4xf32>
    %cst_20 = arith.constant dense<0.000000e+00> : vector<8xf32>
    %39 = vector.multi_reduction <add>, %38, %cst_20 [1] : vector<8x4xf32> to vector<8xf32>
    %40 = vector.shape_cast %39 : vector<8xf32> to vector<8x1xf32>
    %41 = tpu.iota {dimensions = array<i32: 1>} : vector<8x128xi32>
    %c0_i32 = arith.constant 0 : i32
    %42 = vector.broadcast %c0_i32 : i32 to vector<8x128xi32>
    %43 = arith.cmpi eq, %41, %42 : vector<8x128xi32>
    %44 = arith.sitofp %34 : vector<8x1xi32> to vector<8x1xf32>
    %c1_i32 = arith.constant 1 : i32
    %45 = vector.broadcast %c1_i32 : i32 to vector<8x128xi32>
    %46 = arith.cmpi eq, %41, %45 : vector<8x128xi32>
    %cst_21 = arith.constant 0.000000e+00 : f32
    %47 = vector.shape_cast %40 : vector<8x1xf32> to vector<8x1xf32>
    %48 = vector.broadcast %47 : vector<8x1xf32> to vector<8x128xf32>
    %49 = vector.broadcast %cst_21 : f32 to vector<8x128xf32>
    %50 = arith.select %46, %48, %49 : vector<8x128xi1>, vector<8x128xf32>
    %51 = vector.shape_cast %44 : vector<8x1xf32> to vector<8x1xf32>
    %52 = vector.broadcast %51 : vector<8x1xf32> to vector<8x128xf32>
    %53 = arith.select %43, %52, %50 : vector<8x128xi1>, vector<8x128xf32>
    %c0_22 = arith.constant 0 : index
    %c0_23 = arith.constant 0 : index
    %54 = vector.load %arg8[%c0_22, %c0_23] : memref<8x128xf32, #tpu.memory_space<vmem>>, vector<8x128xf32>
    tpu.vector_store %arg8[%c0_22, %c0_23], %53 {strides = array<i32>} : memref<8x128xf32, #tpu.memory_space<vmem>>, vector<8x128xf32>,
    return
  }
  func.func @transform_0(%arg0: i32) -> (i32, i32) {
    %c0_i32 = arith.constant 0 : i32
    %c0_i32_0 = arith.constant 0 : i32
    return %arg0, %c0_i32 : i32, i32
  }
  func.func @transform_1(%arg0: i32) -> (i32, i32) {
    %c0_i32 = arith.constant 0 : i32
    %c0_i32_0 = arith.constant 0 : i32
    return %arg0, %c0_i32 : i32, i32
  }
  func.func @transform_2(%arg0: i32) -> (i32, i32) {
    %c0_i32 = arith.constant 0 : i32
    %c0_i32_0 = arith.constant 0 : i32
    %c0_i32_1 = arith.constant 0 : i32
    return %c0_i32, %c0_i32_0 : i32, i32
  }
  func.func @transform_3(%arg0: i32) -> (i32, i32) {
    %c0_i32 = arith.constant 0 : i32
    %c0_i32_0 = arith.constant 0 : i32
    %c0_i32_1 = arith.constant 0 : i32
    return %c0_i32, %c0_i32_0 : i32, i32
  }
  func.func @transform_4(%arg0: i32) -> (i32, i32) {
    %c0_i32 = arith.constant 0 : i32
    %c0_i32_0 = arith.constant 0 : i32
    %c0_i32_1 = arith.constant 0 : i32
    return %c0_i32, %c0_i32_0 : i32, i32
  }
  func.func @transform_5(%arg0: i32) -> (i32, i32) {
    %c0_i32 = arith.constant 0 : i32
    %c0_i32_0 = arith.constant 0 : i32
    %c0_i32_1 = arith.constant 0 : i32
    return %c0_i32, %c0_i32_0 : i32, i32
  }
  func.func @transform_6(%arg0: i32) -> (i32, i32) {
    %c0_i32 = arith.constant 0 : i32
    %c0_i32_0 = arith.constant 0 : i32
    return %arg0, %c0_i32 : i32, i32
  }
  func.func @transform_7(%arg0: i32) -> (i32, i32) {
    %c0_i32 = arith.constant 0 : i32
    %c0_i32_0 = arith.constant 0 : i32
    return %arg0, %c0_i32 : i32, i32
  }
}

</mosaic_0001>

<llo_original>
// kernel: _actor_call.1
$region0: #{_actor_call.1}
  #allocation0 [shape = 'u32[]', space=smem, size = 0x4, offset = 0x4, fixed_abs, tag = 'smem constant byte address 0x4 - core index']
  #allocation1 [shape = 'u32[144,128]{1,0:T(1,128)}', space=vmem, size = 0x12000, scoped, tag = 'internal scratch']
  %s0 = inlined_call_operand.vmem [shape: f32[8,16], index: 0, kind: input, shape index: {}]
  %s1 = inlined_call_operand.vmem [shape: f32[8,4], index: 1, kind: input, shape index: {}]
  %s2 = inlined_call_operand.vmem [shape: f32[16,32], index: 2, kind: input, shape index: {}]
  %s3 = inlined_call_operand.vmem [shape: f32[1,32], index: 3, kind: input, shape index: {}]
  %s4 = inlined_call_operand.vmem [shape: f32[32,4], index: 4, kind: input, shape index: {}]
  %s5 = inlined_call_operand.vmem [shape: f32[1,4], index: 5, kind: input, shape index: {}]
  %s6 = inlined_call_operand.vmem [shape: f32[8,4], index: 6, kind: output, shape index: {0}]
  %s7 = inlined_call_operand.hbm [shape: f32[8,128], index: 7, kind: output, shape index: {1}]
  %8 = xla_tuple %s6, %s7
  %s9 = sld [smem:[#allocation0]]
  $region42: #{_actor_call.1} parent=0
    _
  %s11 = ssub.s32 1, %s9
  %s12 = scalar_select 0, %s11, %s9
  $region1: #{_actor_call.1} parent=0
    #allocation2 [shape = 'u8[4096]{0}', space=vmem, size = 0x1000, scoped, tag = 'output window, operand 1, single buffered']
    #allocation3 [shape = 's32[1]{0}', space=sflag, size = 0x4, scoped, tag = 'scoped memory for _actor_call.1']
    %13 = vsyncpa [#allocation3], 0
    // Predicated region
    $region2: #{_actor_call.1} parent=1 // pred_check
      _
    $region3: #{_actor_call.1} parent=1 // pred_check_branch
      %15 = sbr.rel (0) target = $region5
    $region4: #{_actor_call.1} parent=1 // pred_region
      _
    $region5: #{_actor_call.1} parent=1 // pred_fallthru
      _
    // Predicated region
    $region6: #{_actor_call.1} parent=1 // pred_check
      _
    $region7: #{_actor_call.1} parent=1 // pred_check_branch
      %17 = sbr.rel (0) target = $region9
    $region8: #{_actor_call.1} parent=1 // pred_region
      _
    $region9: #{_actor_call.1} parent=1 // pred_fallthru
      _
    // Predicated region
    $region10: #{_actor_call.1} parent=1 // pred_check
      _
    $region11: #{_actor_call.1} parent=1 // pred_check_branch
      %19 = sbr.rel (0) target = $region13
    $region12: #{_actor_call.1} parent=1 // pred_region
      _
    $region13: #{_actor_call.1} parent=1 // pred_fallthru
      _
    // Predicated region
    $region14: #{_actor_call.1} parent=1 // pred_check
      _
    $region15: #{_actor_call.1} parent=1 // pred_check_branch
      %21 = sbr.rel (0) target = $region17
    $region16: #{_actor_call.1} parent=1 // pred_region
      _
    $region17: #{_actor_call.1} parent=1 // pred_fallthru
      _
    // Predicated region
    $region18: #{_actor_call.1} parent=1 // pred_check
      _
    $region19: #{_actor_call.1} parent=1 // pred_check_branch
      %23 = sbr.rel (0) target = $region21
    $region20: #{_actor_call.1} parent=1 // pred_region
      _
    $region21: #{_actor_call.1} parent=1 // pred_fallthru
      _
    // Predicated region
    $region22: #{_actor_call.1} parent=1 // pred_check
      _
    $region23: #{_actor_call.1} parent=1 // pred_check_branch
      %25 = sbr.rel (0) target = $region25
    $region24: #{_actor_call.1} parent=1 // pred_region
      _
    $region25: #{_actor_call.1} parent=1 // pred_fallthru
      _
    %v26 = vld [vmem:[%s0] sm:$0xff]
    %v27 = vld [vmem:[%s2] sm:$0xff]
    %v28 = vld [vmem:[%s2 + $0x8] sm:$0xff]
    %v29 = vld [vmem:[%s3] sm:$0x1]
    %v31 = vlaneseq
    %v32 = vshrl.u32 %v31, 7
    %v33 = vsub.s32 0, %v32
    %v34 = vrot.slane %v29, %v33
    %vm36 = vcmask 130048
    %v38 = vsel %vm36, %v26, 0
    %40 = vmatprep.subr.mxu0 0.0
    %41 = vmatpush1.msra.mxu0 0.0
    %42 = vmatprep.subr.mxu0 0.0
    %43 = vmatpush1.msra.mxu0 0.0
    %44 = vmatprep.subr.mxu0 0.0
    %45 = vmatpush1.msra.mxu0 0.0
    %46 = vmatprep.subr.mxu0 0.0
    %47 = vmatpush1.msra.mxu0 0.0
    %48 = vmatprep.subr.mxu0 0.0
    %49 = vmatpush1.msra.mxu0 0.0
    %50 = vmatprep.subr.mxu0 0.0
    %51 = vmatpush1.msra.mxu0 0.0
    %52 = vmatprep.subr.mxu0 0.0
    %53 = vmatpush1.msra.mxu0 0.0
    %54 = vmatprep.subr.mxu0 0.0
    %55 = vmatpush1.msra.mxu0 0.0
    %56 = vmatprep.subr.mxu0 0.0
    %57 = vmatpush1.msra.mxu0 0.0
    %58 = vmatprep.subr.mxu0 0.0
    %59 = vmatpush1.msra.mxu0 0.0
    %60 = vmatprep.subr.mxu0 0.0
    %61 = vmatpush1.msra.mxu0 0.0
    %62 = vmatprep.subr.mxu0 0.0
    %63 = vmatpush1.msra.mxu0 0.0
    %64 = vmatprep.subr.mxu0 0.0
    %65 = vmatpush1.msra.mxu0 0.0
    %66 = vmatprep.subr.mxu0 0.0
    %67 = vmatpush1.msra.mxu0 0.0
    %68 = vmatprep.subr.mxu0 0.0
    %69 = vmatpush1.msra.mxu0 %v28
    %70 = vmatprep.subr.mxu0 0.0
    %71 = vmatpush1.msra.mxu0 %v27
    %72 = vmatprep.subr.mxu0 0.0
    %73 = vmatpush2.msra.mxu0 0.0
    %74 = vmatprep.subr.mxu0 0.0
    %75 = vmatpush2.msra.mxu0 0.0
    %76 = vmatprep.subr.mxu0 0.0
    %77 = vmatpush2.msra.mxu0 0.0
    %78 = vmatprep.subr.mxu0 0.0
    %79 = vmatpush2.msra.mxu0 0.0
    %80 = vmatprep.subr.mxu0 0.0
    %81 = vmatpush2.msra.mxu0 0.0
    %82 = vmatprep.subr.mxu0 0.0
    %83 = vmatpush2.msra.mxu0 0.0
    %84 = vmatprep.subr.mxu0 0.0
    %85 = vmatpush2.msra.mxu0 0.0
    %86 = vmatprep.subr.mxu0 0.0
    %87 = vmatpush2.msra.mxu0 0.0
    %88 = vmatprep.subr.mxu0 0.0
    %89 = vmatpush2.msra.mxu0 0.0
    %90 = vmatprep.subr.mxu0 0.0
    %91 = vmatpush2.msra.mxu0 0.0
    %92 = vmatprep.subr.mxu0 0.0
    %93 = vmatpush2.msra.mxu0 0.0
    %94 = vmatprep.subr.mxu0 0.0
    %95 = vmatpush2.msra.mxu0 0.0
    %96 = vmatprep.subr.mxu0 0.0
    %97 = vmatpush2.msra.mxu0 0.0
    %98 = vmatprep.subr.mxu0 0.0
    %99 = vmatpush2.msra.mxu0 0.0
    %100 = vmatprep.subr.mxu0 0.0
    %101 = vmatpush2.msra.mxu0 0.0
    %102 = vmatprep.subr.mxu0 0.0
    %103 = vmatpush2.msra.mxu0 0.0
    %104 = vmatprep.mubr.f32.mxu0 0.0
    %105 = vmatmul.mubr.f32.gmra.mxu0 %v38
    %v106 = vpop.f32.mrf.mxu0
    %v107 = vadd.f32 %v34, %v106
    %v108 = vpop.f32.mrf.mxu0
    %109 = vdwg.mxu0
    %v110 = vmax.f32 %v107, 0.0
    %v111 = vld [vmem:[%s4] sm:$0xff]
    %v112 = vld [vmem:[%s4 + $0x8] sm:$0xff]
    %v113 = vld [vmem:[%s4 + $0x10] sm:$0xff]
    %v114 = vld [vmem:[%s4 + $0x18] sm:$0xff]
    %v115 = vld [vmem:[%s5] sm:$0x1]
    %v117 = vlaneseq
    %v118 = vshrl.u32 %v117, 7
    %v119 = vsub.s32 0, %v118
    %v120 = vrot.slane %v115, %v119
    %vm122 = vcmask 261120
    %v124 = vsel %vm122, %v110, 0
    %126 = vmatprep.subr.mxu0 0.0
    %127 = vmatpush1.msra.mxu0 0.0
    %128 = vmatprep.subr.mxu0 0.0
    %129 = vmatpush1.msra.mxu0 0.0
    %130 = vmatprep.subr.mxu0 0.0
    %131 = vmatpush1.msra.mxu0 0.0
    %132 = vmatprep.subr.mxu0 0.0
    %133 = vmatpush1.msra.mxu0 0.0
    %134 = vmatprep.subr.mxu0 0.0
    %135 = vmatpush1.msra.mxu0 0.0
    %136 = vmatprep.subr.mxu0 0.0
    %137 = vmatpush1.msra.mxu0 0.0
    %138 = vmatprep.subr.mxu0 0.0
    %139 = vmatpush1.msra.mxu0 0.0
    %140 = vmatprep.subr.mxu0 0.0
    %141 = vmatpush1.msra.mxu0 0.0
    %142 = vmatprep.subr.mxu0 0.0
    %143 = vmatpush1.msra.mxu0 0.0
    %144 = vmatprep.subr.mxu0 0.0
    %145 = vmatpush1.msra.mxu0 0.0
    %146 = vmatprep.subr.mxu0 0.0
    %147 = vmatpush1.msra.mxu0 0.0
    %148 = vmatprep.subr.mxu0 0.0
    %149 = vmatpush1.msra.mxu0 0.0
    %150 = vmatprep.subr.mxu0 0.0
    %151 = vmatpush1.msra.mxu0 %v114
    %152 = vmatprep.subr.mxu0 0.0
    %153 = vmatpush1.msra.mxu0 %v113
    %154 = vmatprep.subr.mxu0 0.0
    %155 = vmatpush1.msra.mxu0 %v112
    %156 = vmatprep.subr.mxu0 0.0
    %157 = vmatpush1.msra.mxu0 %v111
    %158 = vmatprep.subr.mxu0 0.0
    %159 = vmatpush2.msra.mxu0 0.0
    %160 = vmatprep.subr.mxu0 0.0
    %161 = vmatpush2.msra.mxu0 0.0
    %162 = vmatprep.subr.mxu0 0.0
    %163 = vmatpush2.msra.mxu0 0.0
    %164 = vmatprep.subr.mxu0 0.0
    %165 = vmatpush2.msra.mxu0 0.0
    %166 = vmatprep.subr.mxu0 0.0
    %167 = vmatpush2.msra.mxu0 0.0
    %168 = vmatprep.subr.mxu0 0.0
    %169 = vmatpush2.msra.mxu0 0.0
    %170 = vmatprep.subr.mxu0 0.0
    %171 = vmatpush2.msra.mxu0 0.0
    %172 = vmatprep.subr.mxu0 0.0
    %173 = vmatpush2.msra.mxu0 0.0
    %174 = vmatprep.subr.mxu0 0.0
    %175 = vmatpush2.msra.mxu0 0.0
    %176 = vmatprep.subr.mxu0 0.0
    %177 = vmatpush2.msra.mxu0 0.0
    %178 = vmatprep.subr.mxu0 0.0
    %179 = vmatpush2.msra.mxu0 0.0
    %180 = vmatprep.subr.mxu0 0.0
    %181 = vmatpush2.msra.mxu0 0.0
    %182 = vmatprep.subr.mxu0 0.0
    %183 = vmatpush2.msra.mxu0 0.0
    %184 = vmatprep.subr.mxu0 0.0
    %185 = vmatpush2.msra.mxu0 0.0
    %186 = vmatprep.subr.mxu0 0.0
    %187 = vmatpush2.msra.mxu0 0.0
    %188 = vmatprep.subr.mxu0 0.0
    %189 = vmatpush2.msra.mxu0 0.0
    %190 = vmatprep.mubr.f32.mxu0 0.0
    %191 = vmatmul.mubr.f32.gmra.mxu0 %v124
    %v192 = vpop.f32.mrf.mxu0
    %v193 = vadd.f32 %v120, %v192
    %v194 = vpop.f32.mrf.mxu0
    %195 = vdwg.mxu0
    %vm196 = vcmask 31744
    %197 = vst.msk [vmem:[%s6] sm:$0xff] %vm196, %v193
    %v198 = vsel %vm196, %v193, -inf
    %199 = vmax.xlane.f32.xlu0 %v198
    %v200 = vpop.xlane.xlu0 %199
    %v201 = vsub.f32 %v193, %v200
    %v202 = vmul.f32 %v201, 1.442695
    %v203 = vpow.pop %v202
    %v204 = vsel %vm196, %v203, 0.0
    %205 = vadd.xlane.f32.xlu0 %v204
    %v206 = vpop.xlane.xlu0 %205
    %v207 = vlog2.pop %v206
    %v208 = vmul.f32 %v207, 0.6931472
    %v209 = vsub.f32 %v201, %v208
    %v210 = vld [vmem:[%s1] sm:$0xff]
    %v211 = vadd.f32 %v201, %v210
    %v212 = vlaneseq
    %v213 = vand.u32 %v212, 127
    %v214 = vsel %vm196, %v211, -inf
    %215 = vmax.xlane.f32.xlu0 %v214
    %v216 = vpop.xlane.xlu0 %215
    %vm217 = vcmp.eq.f32.partialorder %v211, %v216
    %v218 = vsel %vm217, %v213, 4
    %v219 = vsel %vm196, %v218, 2147483647
    %v220 = vand.u32 %v219, 65535
    %v221 = vshra.s32 %v219, 16
    %v222 = vcvt.s32.f32 %v220
    %v223 = vcvt.s32.f32 %v221
    %224 = vmin.xlane.f32.xlu0 %v223
    %v225 = vpop.xlane.xlu0 %224
    %vm226 = vcmp.eq.f32.partialorder %v223, %v225
    %v227 = vsel %vm226, %v222, inf
    %228 = vmin.xlane.f32.xlu0 %v227
    %v229 = vpop.xlane.xlu0 %228
    %v230 = vcvt.f32.s32 %v229
    %v231 = vcvt.f32.s32 %v225
    %v232 = vshll.u32 %v231, 16
    %v233 = vadd.s32 %v232, %v230
    %vm234 = vcmp.eq.s32.totalorder %v213, %v233
    %v235 = vsel %vm234, %v209, 0.0
    %v236 = vsel %vm196, %v235, 0.0
    %237 = vadd.xlane.f32.xlu0 %v236
    %v238 = vpop.xlane.xlu0 %237
    %vm239 = vcmp.eq.s32.totalorder %v213, 0
    %v240 = vcvt.s32.f32 %v233
    %vm241 = vcmp.eq.s32.totalorder %v213, 1
    %v242 = vsel %vm241, %v238, 0.0
    %v243 = vsel %vm239, %v240, %v242
    %244 = vst [vmem:[#allocation2] sm:$0xff] %v243
    // Predicated region
    $region26: #{_actor_call.1} parent=1 // pred_check
      _
    $region27: #{_actor_call.1} parent=1 // pred_check_branch
      %246 = sbr.rel (0) target = $region29
    $region28: #{_actor_call.1} parent=1 // pred_region
      _
    $region29: #{_actor_call.1} parent=1 // pred_fallthru
      _
    // Predicated region
    $region30: #{_actor_call.1} parent=1 // pred_check
      _
    $region31: #{_actor_call.1} parent=1 // pred_check_branch
      %248 = sbr.rel (0) target = $region33
    $region32: #{_actor_call.1} parent=1 // pred_region
      %s250 = ssub.s32 128, 128
      %251 = vsyncadd [#allocation3], %s250
      %s253 = sshll.u32 [#allocation2], 4
      %s254 = int_to_ptr.vmem [resolvable:$true] %s253
      %256 = dma.vmem_to_hbm [thread:$0]  %s254, 128, %s7, [#allocation3]
    $region33: #{_actor_call.1} parent=1 // pred_fallthru
      _
    // Predicated region
    $region34: #{_actor_call.1} parent=1 // pred_check
      _
    $region35: #{_actor_call.1} parent=1 // pred_check_branch
      %258 = sbr.rel (0) target = $region37
    $region36: #{_actor_call.1} parent=1 // pred_region
      _
    $region37: #{_actor_call.1} parent=1 // pred_fallthru
      _
    // Predicated region
    $region38: #{_actor_call.1} parent=1 // pred_check
      _
    $region39: #{_actor_call.1} parent=1 // pred_check_branch
      %260 = sbr.rel (0) target = $region41
    $region40: #{_actor_call.1} parent=1 // pred_region
      %261 = dma.done [#allocation3], 128
    $region41: #{_actor_call.1} parent=1 // pred_fallthru
      _
    %262 = vsyncpa [#allocation3], 1

</llo_original>
